<compile_context>
chip_gen: v7x
topology: tpu7x:2x2x1
jax: 0.10.0
libtpu: 0.0.40
codegen_flags: <defaults>
</compile_context>

<pallas_src>
import functools

import jax
import jax.numpy as jnp
import numpy as np
from jax.experimental import pallas as pl
from jax.experimental.pallas import tpu as pltpu

_SENTINEL = 2**30  # > any valid sequence index; marks "no EOS seen yet"


def _round_up(x: int, m: int) -> int:
    return ((x + m - 1) // m) * m


def _choose_tiles(B: int, S: int, itemsize: int = 4,
                  max_tile_bytes: int = 4 * 1024 * 1024):
    """Large lane-dense tiles, capped so 2 inputs x 2 buffers fit VMEM on v7x."""
    tile_s = min(_round_up(S, 128), 2048)   # lane axis, multiple of 128
    tile_b = min(_round_up(B, 8), 512)      # sublane axis, multiple of 8
    while tile_b * tile_s * itemsize > max_tile_bytes and tile_b > 8:
        tile_b = max(8, (tile_b // 2) // 8 * 8)
    while tile_b * tile_s * itemsize > max_tile_bytes and tile_s > 128:
        tile_s = max(128, (tile_s // 2) // 128 * 128)
    return tile_b, tile_s


def _song_len_loss_kernel(eos_id, max_seq_len,
                          out_tok_ref, tgt_tok_ref, loss_ref,
                          out_min_ref, tgt_min_ref):
    s = pl.program_id(1)

    @pl.when(s == 0)
    def _init():
        out_min_ref[...] = jnp.full(out_min_ref.shape, _SENTINEL, dtype=jnp.int32)
        tgt_min_ref[...] = jnp.full(tgt_min_ref.shape, _SENTINEL, dtype=jnp.int32)

    tb, ts = out_tok_ref.shape
    # Global sequence index for this S-tile.
    iota = s * ts + jax.lax.broadcasted_iota(jnp.int32, (tb, ts), 1)

    def first_eos_in_tile(tok):
        idx = jnp.where(tok == jnp.int32(eos_id), iota, jnp.int32(_SENTINEL))
        return jnp.min(idx, axis=1, keepdims=True)            # one XLU reduction

    out_min_ref[...] = jnp.minimum(out_min_ref[...],
                                   first_eos_in_tile(out_tok_ref[...]))
    tgt_min_ref[...] = jnp.minimum(tgt_min_ref[...],
                                   first_eos_in_tile(tgt_tok_ref[...]))

    @pl.when(s == pl.num_programs(1) - 1)
    def _finalize():
        def to_len(m):
            # first < SENTINEL  <=>  row contains EOS (no extra max-reduction)
            return jnp.where(m < jnp.int32(_SENTINEL), m,
                             jnp.int32(max_seq_len)).astype(jnp.float32)

        out_len = to_len(out_min_ref[...])                     # (tb, 1)
        tgt_len = to_len(tgt_min_ref[...])                     # (tb, 1)
        L = jnp.float32(max_seq_len)
        max_len_err = jnp.maximum(tgt_len, L - tgt_len) ** 2
        loss_ref[...] = (out_len - tgt_len) ** 2 / max_len_err


def song_len_loss(output_tokens, target_tokens, *, eos_id: int,
                  max_seq_len: int, tile_b: int = None, tile_s: int = None):
    """output_tokens, target_tokens: (B, S) integer token ids. Returns scalar f32."""
    assert max_seq_len > 0, "max_seq_len must be positive (avoids div-by-zero)"
    B, S = output_tokens.shape
    assert target_tokens.shape == (B, S)

    out32 = output_tokens.astype(jnp.int32)
    tgt32 = target_tokens.astype(jnp.int32)
    # TODO(synk): tokens could be passed as int16/int8 to halve/quarter HBM bytes.

    auto_b, auto_s = _choose_tiles(B, S)
    tile_b = auto_b if tile_b is None else tile_b
    tile_s = auto_s if tile_s is None else tile_s
    assert tile_b % 8 == 0 and tile_s % 128 == 0

    B_pad = _round_up(B, tile_b)
    S_pad = _round_up(S, tile_s)
    pad_val = eos_id - 1 if eos_id > 0 else eos_id + 1  # anything != eos_id
    if (B_pad, S_pad) != (B, S):
        pad = ((0, B_pad - B), (0, S_pad - S))
        out32 = jnp.pad(out32, pad, constant_values=pad_val)
        tgt32 = jnp.pad(tgt32, pad, constant_values=pad_val)

    num_b = B_pad // tile_b
    num_s = S_pad // tile_s

    tile_bytes = tile_b * tile_s * 4
    vmem_need = 2 * 2 * tile_bytes + 4 * tile_b * 4        # inputs dbl-buffered + out/scratch
    vmem_limit = int(min(48 * 1024 * 1024,
                         max(16 * 1024 * 1024, vmem_need + 8 * 1024 * 1024)))

    kernel = functools.partial(_song_len_loss_kernel, eos_id, max_seq_len)

    per_row = pl.pallas_call(
        kernel,
        out_shape=jax.ShapeDtypeStruct((B_pad, 1), jnp.float32),
        grid_spec=pltpu.PrefetchScalarGridSpec(
            num_scalar_prefetch=0,
            grid=(num_b, num_s),                           # reduction (S) axis last
            in_specs=[
                pl.BlockSpec((tile_b, tile_s), lambda i, s: (i, s)),
                pl.BlockSpec((tile_b, tile_s), lambda i, s: (i, s)),
            ],
            out_specs=pl.BlockSpec((tile_b, 1), lambda i, s: (i, 0)),
            scratch_shapes=[
                pltpu.VMEM((tile_b, 1), jnp.int32),        # running min, output seq
                pltpu.VMEM((tile_b, 1), jnp.int32),        # running min, target seq
            ],
        ),
        compiler_params=pltpu.CompilerParams(
            dimension_semantics=("parallel", "arbitrary"),
            vmem_limit_bytes=vmem_limit,
        ),
        cost_estimate=pl.CostEstimate(
            flops=4 * B_pad * S_pad,
            transcendentals=0,
            bytes_accessed=2 * B_pad * S_pad * 4 + B_pad * 4,
        ),
    )(out32, tgt32)

    # Final mean over the true batch rows (padded rows are sliced off).
    return jnp.sum(per_row[:B, 0]) / jnp.float32(B)


def _numpy_reference(output_tokens, target_tokens, eos_id, max_seq_len):
    def get_len(seq):
        eos_mask = seq == eos_id
        return np.where(np.any(eos_mask, axis=1),
                        np.argmax(eos_mask, axis=1), max_seq_len)
    o = get_len(np.asarray(output_tokens))
    t = get_len(np.asarray(target_tokens))
    max_len_error = np.maximum(t, max_seq_len - t) ** 2
    return np.mean((o - t) ** 2 / max_len_error)


if __name__ == "__main__":
    EOS_ID = 1

    def make_inputs(key, B, S, vocab, n_eos_out, n_eos_tgt):
        k_out, k_tgt, k_po, k_pt = jax.random.split(key, 4)
        out_tok = jax.random.randint(k_out, (B, S), 2, vocab, dtype=jnp.int32)
        tgt_tok = jax.random.randint(k_tgt, (B, S), 2, vocab, dtype=jnp.int32)
        eos_pos_o = jax.random.randint(k_po, (B,), 0, S, dtype=jnp.int32)
        eos_pos_t = jax.random.randint(k_pt, (B,), 0, S, dtype=jnp.int32)
        col = jnp.arange(S, dtype=jnp.int32)[None, :]
        row = jnp.arange(B, dtype=jnp.int32)[:, None]
        out_tok = jnp.where((col == eos_pos_o[:, None]) & (row < n_eos_out),
                            EOS_ID, out_tok)
        tgt_tok = jnp.where((col == eos_pos_t[:, None]) & (row < n_eos_tgt),
                            EOS_ID, tgt_tok)
        return out_tok, tgt_tok

    key = jax.random.PRNGKey(0)
    k1, k2 = jax.random.split(key)

    # Case 1: tiny shapes, auto tiles (single-tile grid).
    B1, S1, L1 = 4, 16, 16
    o1, t1 = make_inputs(k1, B1, S1, 32, 3, 2)
    loss1 = jax.block_until_ready(
        song_len_loss(o1, t1, eos_id=EOS_ID, max_seq_len=L1))
    ref1 = _numpy_reference(o1, t1, EOS_ID, L1)
    np.testing.assert_allclose(float(loss1), float(ref1), rtol=1e-5, atol=1e-6)

    # Case 2: forced small tiles -> multi-tile grid + B/S padding paths.
    B2, S2, L2 = 12, 300, 600
    o2, t2 = make_inputs(k2, B2, S2, 64, 9, 7)
    loss2 = jax.block_until_ready(
        song_len_loss(o2, t2, eos_id=EOS_ID, max_seq_len=L2,
                      tile_b=8, tile_s=128))
    ref2 = _numpy_reference(o2, t2, EOS_ID, L2)
    np.testing.assert_allclose(float(loss2), float(ref2), rtol=1e-5, atol=1e-6)

    print("KERNEL_OK")
</pallas_src>

<mosaic_0001>
module attributes {stable_mosaic.version = 11 : i64} {
  func.func @_song_len_loss_kernel(%arg0: i32, %arg1: i32, %arg2: memref<8x128xi32, #tpu.memory_space<vmem>>, %arg3: memref<8x128xi32, #tpu.memory_space<vmem>>, %arg4: memref<8x1xf32, #tpu.memory_space<vmem>>, %arg5: memref<8x1xi32, #tpu.memory_space<vmem>>, %arg6: memref<8x1xi32, #tpu.memory_space<vmem>>) attributes {dimension_semantics = [#tpu.dimension_semantics<parallel>, #tpu.dimension_semantics<arbitrary>], iteration_bounds = array<i64: 1, 1>, scalar_prefetch = 0 : i64, scratch_operands = 2 : i64, tpu.core_type = #tpu.core_type<tc>, window_params = [{transform_indices = @transform_0, window_bounds = array<i64: 8, 128>}, {transform_indices = @transform_1, window_bounds = array<i64: 8, 128>}, {transform_indices = @transform_2, window_bounds = array<i64: 8, 1>}]} {
    %c0_i32 = arith.constant 0 : i32
    %0 = arith.cmpi eq, %arg1, %c0_i32 : i32
    %1 = arith.extui %0 : i1 to i32
    %c0_i32_0 = arith.constant 0 : i32
    %2 = arith.cmpi ne, %1, %c0_i32_0 : i32
    scf.if %2 {
      %c1073741824_i32_17 = arith.constant 1073741824 : i32
      %30 = vector.broadcast %c1073741824_i32_17 : i32 to vector<8x1xi32>
      %c0_18 = arith.constant 0 : index
      %c0_19 = arith.constant 0 : index
      %31 = vector.load %arg5[%c0_18, %c0_19] : memref<8x1xi32, #tpu.memory_space<vmem>>, vector<8x1xi32>
      tpu.vector_store %arg5[%c0_18, %c0_19], %30 {strides = array<i32>} : memref<8x1xi32, #tpu.memory_space<vmem>>, vector<8x1xi32>,
      %c1073741824_i32_20 = arith.constant 1073741824 : i32
      %32 = vector.broadcast %c1073741824_i32_20 : i32 to vector<8x1xi32>
      %c0_21 = arith.constant 0 : index
      %c0_22 = arith.constant 0 : index
      %33 = vector.load %arg6[%c0_21, %c0_22] : memref<8x1xi32, #tpu.memory_space<vmem>>, vector<8x1xi32>
      tpu.vector_store %arg6[%c0_21, %c0_22], %32 {strides = array<i32>} : memref<8x1xi32, #tpu.memory_space<vmem>>, vector<8x1xi32>,
    } else {
    }
    %c128_i32 = arith.constant 128 : i32
    %3 = arith.muli %arg1, %c128_i32 : i32
    %4 = tpu.iota {dimensions = array<i32: 1>} : vector<8x128xi32>
    %5 = vector.broadcast %3 : i32 to vector<8x128xi32>
    %6 = arith.addi %5, %4 : vector<8x128xi32>
    %c0 = arith.constant 0 : index
    %c0_1 = arith.constant 0 : index
    %7 = vector.load %arg5[%c0, %c0_1] : memref<8x1xi32, #tpu.memory_space<vmem>>, vector<8x1xi32>
    %c0_2 = arith.constant 0 : index
    %c0_3 = arith.constant 0 : index
    %8 = vector.load %arg2[%c0_2, %c0_3] : memref<8x128xi32, #tpu.memory_space<vmem>>, vector<8x128xi32>
    %c1_i32 = arith.constant 1 : i32
    %9 = vector.broadcast %c1_i32 : i32 to vector<8x128xi32>
    %10 = arith.cmpi eq, %8, %9 : vector<8x128xi32>
    %c1073741824_i32 = arith.constant 1073741824 : i32
    %11 = vector.broadcast %c1073741824_i32 : i32 to vector<8x128xi32>
    %12 = arith.select %10, %6, %11 : vector<8x128xi1>, vector<8x128xi32>
    %cst = arith.constant dense<2147483647> : vector<8xi32>
    %13 = vector.multi_reduction <minsi>, %12, %cst [1] : vector<8x128xi32> to vector<8xi32>
    %14 = vector.shape_cast %13 : vector<8xi32> to vector<8x1xi32>
    %15 = arith.minsi %7, %14 : vector<8x1xi32>
    %c0_4 = arith.constant 0 : index
    %c0_5 = arith.constant 0 : index
    %16 = vector.load %arg5[%c0_4, %c0_5] : memref<8x1xi32, #tpu.memory_space<vmem>>, vector<8x1xi32>
    tpu.vector_store %arg5[%c0_4, %c0_5], %15 {strides = array<i32>} : memref<8x1xi32, #tpu.memory_space<vmem>>, vector<8x1xi32>,
    %c0_6 = arith.constant 0 : index
    %c0_7 = arith.constant 0 : index
    %17 = vector.load %arg6[%c0_6, %c0_7] : memref<8x1xi32, #tpu.memory_space<vmem>>, vector<8x1xi32>
    %c0_8 = arith.constant 0 : index
    %c0_9 = arith.constant 0 : index
    %18 = vector.load %arg3[%c0_8, %c0_9] : memref<8x128xi32, #tpu.memory_space<vmem>>, vector<8x128xi32>
    %c1_i32_10 = arith.constant 1 : i32
    %19 = vector.broadcast %c1_i32_10 : i32 to vector<8x128xi32>
    %20 = arith.cmpi eq, %18, %19 : vector<8x128xi32>
    %c1073741824_i32_11 = arith.constant 1073741824 : i32
    %21 = vector.broadcast %c1073741824_i32_11 : i32 to vector<8x128xi32>
    %22 = arith.select %20, %6, %21 : vector<8x128xi1>, vector<8x128xi32>
    %cst_12 = arith.constant dense<2147483647> : vector<8xi32>
    %23 = vector.multi_reduction <minsi>, %22, %cst_12 [1] : vector<8x128xi32> to vector<8xi32>
    %24 = vector.shape_cast %23 : vector<8xi32> to vector<8x1xi32>
    %25 = arith.minsi %17, %24 : vector<8x1xi32>
    %c0_13 = arith.constant 0 : index
    %c0_14 = arith.constant 0 : index
    %26 = vector.load %arg6[%c0_13, %c0_14] : memref<8x1xi32, #tpu.memory_space<vmem>>, vector<8x1xi32>
    tpu.vector_store %arg6[%c0_13, %c0_14], %25 {strides = array<i32>} : memref<8x1xi32, #tpu.memory_space<vmem>>, vector<8x1xi32>,
    %c0_i32_15 = arith.constant 0 : i32
    %27 = arith.cmpi eq, %arg1, %c0_i32_15 : i32
    %28 = arith.extui %27 : i1 to i32
    %c0_i32_16 = arith.constant 0 : i32
    %29 = arith.cmpi ne, %28, %c0_i32_16 : i32
    scf.if %29 {
      %c0_17 = arith.constant 0 : index
      %c0_18 = arith.constant 0 : index
      %30 = vector.load %arg5[%c0_17, %c0_18] : memref<8x1xi32, #tpu.memory_space<vmem>>, vector<8x1xi32>
      %c1073741824_i32_19 = arith.constant 1073741824 : i32
      %31 = vector.broadcast %c1073741824_i32_19 : i32 to vector<8x1xi32>
      %32 = arith.cmpi slt, %30, %31 : vector<8x1xi32>
      %c16_i32 = arith.constant 16 : i32
      %33 = vector.broadcast %c16_i32 : i32 to vector<8x1xi32>
      %34 = arith.select %32, %30, %33 : vector<8x1xi1>, vector<8x1xi32>
      %35 = arith.sitofp %34 : vector<8x1xi32> to vector<8x1xf32>
      %c0_20 = arith.constant 0 : index
      %c0_21 = arith.constant 0 : index
      %36 = vector.load %arg6[%c0_20, %c0_21] : memref<8x1xi32, #tpu.memory_space<vmem>>, vector<8x1xi32>
      %c1073741824_i32_22 = arith.constant 1073741824 : i32
      %37 = vector.broadcast %c1073741824_i32_22 : i32 to vector<8x1xi32>
      %38 = arith.cmpi slt, %36, %37 : vector<8x1xi32>
      %c16_i32_23 = arith.constant 16 : i32
      %39 = vector.broadcast %c16_i32_23 : i32 to vector<8x1xi32>
      %40 = arith.select %38, %36, %39 : vector<8x1xi1>, vector<8x1xi32>
      %41 = arith.sitofp %40 : vector<8x1xi32> to vector<8x1xf32>
      %cst_24 = arith.constant 1.600000e+01 : f32
      %42 = vector.broadcast %cst_24 : f32 to vector<8x1xf32>
      %43 = arith.subf %42, %41 : vector<8x1xf32>
      %44 = arith.maximumf %41, %43 : vector<8x1xf32>
      %45 = arith.mulf %44, %44 : vector<8x1xf32>
      %46 = arith.subf %35, %41 : vector<8x1xf32>
      %47 = arith.mulf %46, %46 : vector<8x1xf32>
      %48 = arith.divf %47, %45 : vector<8x1xf32>
      %c0_25 = arith.constant 0 : index
      %c0_26 = arith.constant 0 : index
      %49 = vector.load %arg4[%c0_25, %c0_26] : memref<8x1xf32, #tpu.memory_space<vmem>>, vector<8x1xf32>
      tpu.vector_store %arg4[%c0_25, %c0_26], %48 {strides = array<i32>} : memref<8x1xf32, #tpu.memory_space<vmem>>, vector<8x1xf32>,
    } else {
    }
    return
  }
  func.func @transform_0(%arg0: i32, %arg1: i32) -> (i32, i32) {
    %c0_i32 = arith.constant 0 : i32
    return %arg0, %arg1 : i32, i32
  }
  func.func @transform_1(%arg0: i32, %arg1: i32) -> (i32, i32) {
    %c0_i32 = arith.constant 0 : i32
    return %arg0, %arg1 : i32, i32
  }
  func.func @transform_2(%arg0: i32, %arg1: i32) -> (i32, i32) {
    %c0_i32 = arith.constant 0 : i32
    %c0_i32_0 = arith.constant 0 : i32
    return %arg0, %c0_i32 : i32, i32
  }
}

</mosaic_0001>

<llo_original>
// kernel: tpu_custom_call.1
$region0: #{tpu_custom_call.1}
  #allocation0 [shape = 'u32[]', space=smem, size = 0x4, offset = 0x4, fixed_abs, tag = 'smem constant byte address 0x4 - core index']
  #allocation1 [shape = 'u32[144,128]{1,0:T(1,128)}', space=vmem, size = 0x12000, scoped, tag = 'internal scratch']
  #allocation2 [shape = 's32[8,1]{1,0:T(8,128)}', space=vmem, size = 0x1000, scoped, tag = 'scratch operand']
  #allocation3 [shape = 's32[8,1]{1,0:T(8,128)}', space=vmem, size = 0x1000, scoped, tag = 'scratch operand']
  %s0 = inlined_call_operand.hbm [shape: s32[8,128], index: 0, kind: input, shape index: {}]
  %s1 = inlined_call_operand.hbm [shape: s32[8,128], index: 1, kind: input, shape index: {}]
  %s2 = inlined_call_operand.vmem [shape: f32[8,1], index: 2, kind: output, shape index: {}]
  %s3 = sld [smem:[#allocation0]]
  $region34: #{tpu_custom_call.1} parent=0
    _
  %s5 = ssub.s32 1, %s3
  %s6 = scalar_select 0, %s5, %s3
  $region1: #{tpu_custom_call.1} parent=0
    #allocation4 [shape = 'u8[4096]{0}', space=vmem, size = 0x1000, scoped, tag = 'input window, operand 0, single buffered']
    #allocation5 [shape = 's32[1]{0}', space=sflag, size = 0x4, scoped, tag = 'scoped memory for tpu_custom_call.1']
    #allocation6 [shape = 'u8[4096]{0}', space=vmem, size = 0x1000, scoped, tag = 'input window, operand 1, single buffered']
    #allocation7 [shape = 's32[1]{0}', space=sflag, size = 0x4, scoped, tag = 'scoped memory for tpu_custom_call.1']
    %7 = vsyncpa [#allocation5], 0
    %8 = vsyncpa [#allocation7], 0
    // Predicated region
    $region2: #{tpu_custom_call.1} parent=1 // pred_check
      _
    $region3: #{tpu_custom_call.1} parent=1 // pred_check_branch
      %10 = sbr.rel (0) target = $region5
    $region4: #{tpu_custom_call.1} parent=1 // pred_region
      %s12 = ssub.s32 128, 128
      %13 = vsyncadd [#allocation5], %s12
      %s15 = sshll.u32 [#allocation4], 4
      %s16 = int_to_ptr.vmem [resolvable:$true] %s15
      %18 = dma.hbm_to_vmem [thread:$0]  %s0, 128, %s16, [#allocation5]
    $region5: #{tpu_custom_call.1} parent=1 // pred_fallthru
      _
    // Predicated region
    $region6: #{tpu_custom_call.1} parent=1 // pred_check
      _
    $region7: #{tpu_custom_call.1} parent=1 // pred_check_branch
      %20 = sbr.rel (0) target = $region9
    $region8: #{tpu_custom_call.1} parent=1 // pred_region
      %s22 = ssub.s32 128, 128
      %23 = vsyncadd [#allocation7], %s22
      %s25 = sshll.u32 [#allocation6], 4
      %s26 = int_to_ptr.vmem [resolvable:$true] %s25
      %28 = dma.hbm_to_vmem [thread:$0]  %s1, 128, %s26, [#allocation7]
    $region9: #{tpu_custom_call.1} parent=1 // pred_fallthru
      _
    // Predicated region
    $region10: #{tpu_custom_call.1} parent=1 // pred_check
      _
    $region11: #{tpu_custom_call.1} parent=1 // pred_check_branch
      %30 = sbr.rel (0) target = $region13
    $region12: #{tpu_custom_call.1} parent=1 // pred_region
      %31 = dma.done [#allocation5], 128
    $region13: #{tpu_custom_call.1} parent=1 // pred_fallthru
      _
    // Predicated region
    $region14: #{tpu_custom_call.1} parent=1 // pred_check
      _
    $region15: #{tpu_custom_call.1} parent=1 // pred_check_branch
      %33 = sbr.rel (0) target = $region17
    $region16: #{tpu_custom_call.1} parent=1 // pred_region
      %34 = dma.done [#allocation7], 128
    $region17: #{tpu_custom_call.1} parent=1 // pred_fallthru
      _
    %p35 = scmp.eq.s32.totalorder 0, 0
    // Predicated region
    $region18: #{tpu_custom_call.1} parent=1 // pred_check
      %p36 = pneg %p35
    $region19: #{tpu_custom_call.1} parent=1 // pred_check_branch
      %38 = sbr.rel (%p36) target = $region21
    $region20: #{tpu_custom_call.1} parent=1 // pred_region
      %vm39 = vcmask 7168
      %40 = vst.msk [vmem:[#allocation2] sm:$0xff] %vm39, 1073741824
      %41 = vst.msk [vmem:[#allocation3] sm:$0xff] %vm39, 1073741824
    $region21: #{tpu_custom_call.1} parent=1 // pred_fallthru
      _
    %s42 = smul.u32 0, 128
    %v43 = vlaneseq
    %v44 = vand.u32 %v43, 127
    %v45 = vstv %s42
    %v46 = vadd.s32 %v45, %v44
    %v47 = vld [vmem:[#allocation2] sm:$0xff]
    %v48 = vld [vmem:[#allocation4] sm:$0xff]
    %vm49 = vcmp.eq.s32.totalorder %v48, 1
    %v50 = vsel %vm49, %v46, 1073741824
    %v51 = vand.u32 %v50, 65535
    %v52 = vshra.s32 %v50, 16
    %v53 = vcvt.s32.f32 %v51
    %v54 = vcvt.s32.f32 %v52
    %55 = vmin.xlane.f32.xlu0 %v54
    %v56 = vpop.xlane.xlu0 %55
    %vm57 = vcmp.eq.f32.partialorder %v54, %v56
    %v58 = vsel %vm57, %v53, inf
    %59 = vmin.xlane.f32.xlu0 %v58
    %v60 = vpop.xlane.xlu0 %59
    %v61 = vcvt.f32.s32 %v60
    %v62 = vcvt.f32.s32 %v56
    %v63 = vshll.u32 %v62, 16
    %v64 = vadd.s32 %v63, %v61
    %vm65 = vcmp.lt.s32.totalorder %v47, %v64
    %v66 = vsel %vm65, %v47, %v64
    %vm67 = vcmask 7168
    %68 = vst.msk [vmem:[#allocation2] sm:$0xff] %vm67, %v66
    %v69 = vld [vmem:[#allocation3] sm:$0xff]
    %v70 = vld [vmem:[#allocation6] sm:$0xff]
    %vm71 = vcmp.eq.s32.totalorder %v70, 1
    %v72 = vsel %vm71, %v46, 1073741824
    %v73 = vand.u32 %v72, 65535
    %v74 = vshra.s32 %v72, 16
    %v75 = vcvt.s32.f32 %v73
    %v76 = vcvt.s32.f32 %v74
    %77 = vmin.xlane.f32.xlu0 %v76
    %v78 = vpop.xlane.xlu0 %77
    %vm79 = vcmp.eq.f32.partialorder %v76, %v78
    %v80 = vsel %vm79, %v75, inf
    %81 = vmin.xlane.f32.xlu0 %v80
    %v82 = vpop.xlane.xlu0 %81
    %v83 = vcvt.f32.s32 %v82
    %v84 = vcvt.f32.s32 %v78
    %v85 = vshll.u32 %v84, 16
    %v86 = vadd.s32 %v85, %v83
    %vm87 = vcmp.lt.s32.totalorder %v69, %v86
    %v88 = vsel %vm87, %v69, %v86
    %89 = vst.msk [vmem:[#allocation3] sm:$0xff] %vm67, %v88
    // Predicated region
    $region22: #{tpu_custom_call.1} parent=1 // pred_check
      %p90 = pneg %p35
    $region23: #{tpu_custom_call.1} parent=1 // pred_check_branch
      %92 = sbr.rel (%p90) target = $region25
    $region24: #{tpu_custom_call.1} parent=1 // pred_region
      %v93 = vld [vmem:[#allocation2] sm:$0xff]
      %vm94 = vcmp.lt.s32.totalorder %v93, 1073741824
      %v95 = vsel %vm94, %v93, 16
      %v96 = vcvt.s32.f32 %v95
      %v97 = vld [vmem:[#allocation3] sm:$0xff]
      %vm98 = vcmp.lt.s32.totalorder %v97, 1073741824
      %v99 = vsel %vm98, %v97, 16
      %v100 = vcvt.s32.f32 %v99
      %v101 = vsub.f32 16.0, %v100
      %v102 = vmax.f32 %v100, %v101
      %v103 = vmul.f32 %v102, %v102
      %v104 = vsub.f32 %v96, %v100
      %v105 = vmul.f32 %v104, %v104
      %v106 = vrcp.pop %v103
      %v107 = vmul.f32 %v105, %v106
      %108 = vst.msk [vmem:[%s2] sm:$0xff] %vm67, %v107
    $region25: #{tpu_custom_call.1} parent=1 // pred_fallthru
      _
    // Predicated region
    $region26: #{tpu_custom_call.1} parent=1 // pred_check
      _
    $region27: #{tpu_custom_call.1} parent=1 // pred_check_branch
      %110 = sbr.rel (0) target = $region29
    $region28: #{tpu_custom_call.1} parent=1 // pred_region
      _
    $region29: #{tpu_custom_call.1} parent=1 // pred_fallthru
      _
    // Predicated region
    $region30: #{tpu_custom_call.1} parent=1 // pred_check
      _
    $region31: #{tpu_custom_call.1} parent=1 // pred_check_branch
      %112 = sbr.rel (0) target = $region33
    $region32: #{tpu_custom_call.1} parent=1 // pred_region
      _
    $region33: #{tpu_custom_call.1} parent=1 // pred_fallthru
      _
    %113 = vsyncpa [#allocation5], 1
    %114 = vsyncpa [#allocation7], 1

</llo_original>
